<compile_context>
chip_gen: v7x
topology: tpu7x:2x2x1
jax: 0.10.0
libtpu: 0.0.40
codegen_flags: <defaults>
</compile_context>

<pallas_src>
import functools

import numpy as np
import jax
import jax.numpy as jnp
from jax import lax
from jax.experimental import pallas as pl
from jax.experimental.pallas import tpu as pltpu


# ----------------------------------------------------------------------------
# Helpers
# ----------------------------------------------------------------------------
def _make_border_masks(H, W):
    """(9, H*W) f32 masks: masks[t, p] = 1 if 3x3 tap t reads in-bounds at pixel p.

    Tap order t = kh*3 + kw with (dh, dw) = (kh-1, kw-1).  Passing the masks as
    data keeps all zero-padding logic out of HBM (no jnp.pad round trip) and
    out of the kernel's VALU critical path (just one multiply per border tap).
    """
    hh, ww = np.meshgrid(np.arange(H), np.arange(W), indexing="ij")
    masks = np.empty((9, H * W), dtype=np.float32)
    for kh in range(3):
        for kw in range(3):
            dh, dw = kh - 1, kw - 1
            valid = ((hh + dh >= 0) & (hh + dh < H) &
                     (ww + dw >= 0) & (ww + dw < W))
            masks[kh * 3 + kw] = valid.reshape(-1).astype(np.float32)
    return jnp.asarray(masks)


# ----------------------------------------------------------------------------
# Kernels
# ----------------------------------------------------------------------------
def _ext_head_kernel(x_ref, mask_ref, wext_ref, bn_scale_ref, bn_bias_ref,
                     wh_ref, bh_ref, out_ref, patches_ref, *, H, W):
    """One batch element: 3x3 conv (as one im2col matmul) + BN + ReLU + 1x1 conv.

    x_ref:        (1, Cin, H*W)     channel-first, spatial flat on lanes
    mask_ref:     (9, H*W)          border-validity masks for the 9 taps
    wext_ref:     (Cin, 9*Cin)      ext conv weights reordered for im2col
    bn_scale_ref: (Cin, 1)          folded BN scale   gamma / sqrt(var + eps)
    bn_bias_ref:  (Cin, 1)          folded BN bias    beta - mean * scale
    wh_ref:       (Cout, Cin)       1x1 head conv weight
    bh_ref:       (Cout, 1)         head conv bias
    out_ref:      (1, Cout, H*W)    lane-dense output
    patches_ref:  (9*Cin, H*W)      VMEM scratch holding the im2col matrix
    """
    Cin = x_ref.shape[1]
    HW = H * W
    x = x_ref[0]                                    # (Cin, HW)

    # Build im2col patches with lane rolls (XLU) + precomputed border masks.
    for kh in range(3):
        dh = kh - 1
        for kw in range(3):
            dw = kw - 1
            t = kh * 3 + kw
            off = dh * W + dw                       # flat-index shift of tap t
            rolled = x if off == 0 else pltpu.roll(x, (-off) % HW, 1)
            if dh == 0 and dw == 0:
                tap = rolled                        # center tap: always valid
            else:
                tap = rolled * mask_ref[t:t + 1, :]  # sublane-broadcast mask
            patches_ref[t * Cin:(t + 1) * Cin, :] = tap

    # Single MXU matmul over the full K = 9*Cin contraction.
    y = jnp.dot(wext_ref[...], patches_ref[...],
                preferred_element_type=jnp.float32)            # (Cin, HW)

    # Folded BatchNorm (eval mode) + ReLU; per-channel lane broadcast.
    y = jnp.maximum(y * bn_scale_ref[...] + bn_bias_ref[...], 0.0)

    # 1x1 head conv with bias -> lane-dense (Cout, HW) store.
    out = jnp.dot(wh_ref[...], y,
                  preferred_element_type=jnp.float32) + bh_ref[...]
    out_ref[0] = out.astype(out_ref.dtype)


def _head_only_kernel(x_ref, wh_ref, bh_ref, out_ref):
    """One batch element: 1x1 conv with bias (has_ext=False path)."""
    out = jnp.dot(wh_ref[...], x_ref[0],
                  preferred_element_type=jnp.float32) + bh_ref[...]
    out_ref[0] = out.astype(out_ref.dtype)


# ----------------------------------------------------------------------------
# Module wrapper
# ----------------------------------------------------------------------------
class HeadModulePallas:
    """Deterministically initialized equivalent of the PyTorch HeadModule."""

    def __init__(self, in_channels, out_channels, has_ext=False, key=None):
        if key is None:
            key = jax.random.PRNGKey(0)
        k = jax.random.split(key, 6)
        self.in_channels = in_channels
        self.out_channels = out_channels
        self.has_ext = has_ext

        # head: nn.Conv2d(in, out, kernel_size=1) -> weight (out, in), bias (out,)
        self.head_w = (0.02 * jax.random.normal(k[0], (out_channels, in_channels))
                       ).astype(jnp.float32)
        self.head_b = (0.01 * jax.random.normal(k[1], (out_channels,))
                       ).astype(jnp.float32)

        if has_ext:
            # ext conv: nn.Conv2d(in, in, 3, padding=1, bias=False), OIHW weights.
            w = 0.1 * jax.random.normal(k[2], (in_channels, in_channels, 3, 3))
            self.ext_w_oihw = w.astype(jnp.float32)
            # Reorder OIHW -> (O, Kh, Kw, I) -> (O, 9*I) to match im2col row
            # order t*Cin + c_in with t = kh*3 + kw.
            self.ext_w_mat = jnp.transpose(self.ext_w_oihw, (0, 2, 3, 1)
                                           ).reshape(in_channels, 9 * in_channels)
            # BatchNorm2d(in) running stats + affine params (eval mode).
            self.bn_gamma = (1.0 + 0.1 * jax.random.normal(k[3], (in_channels,))
                             ).astype(jnp.float32)
            self.bn_beta = (0.1 * jax.random.normal(k[4], (in_channels,))
                            ).astype(jnp.float32)
            self.bn_mean = (0.05 * jax.random.normal(k[5], (in_channels,))
                            ).astype(jnp.float32)
            self.bn_var = jnp.abs(1.0 + 0.1 * jax.random.normal(
                jax.random.fold_in(key, 7), (in_channels,))).astype(jnp.float32)
            self.bn_eps = 1e-5

    # ---- forward -----------------------------------------------------------
    def __call__(self, x_nchw):
        N, C, H, W = x_nchw.shape
        assert C == self.in_channels
        Cin, Cout = self.in_channels, self.out_channels
        HW = H * W

        # Stay channel-first; flattening spatial is a free (contiguous) reshape,
        # so no NCHW<->NHWC transposes / HBM round trips in the wrapper.
        x = x_nchw.reshape(N, Cin, HW).astype(jnp.float32)

        wh = self.head_w                       # (Cout, Cin)
        bh = self.head_b.reshape(Cout, 1)      # (Cout, 1)

        if self.has_ext:
            scale = (self.bn_gamma / jnp.sqrt(self.bn_var + self.bn_eps)
                     ).reshape(Cin, 1)
            bias = self.bn_beta.reshape(Cin, 1) - self.bn_mean.reshape(Cin, 1) * scale
            masks = _make_border_masks(H, W)   # (9, HW), tiny, reused per step

            kernel = functools.partial(_ext_head_kernel, H=H, W=W)
            out = pl.pallas_call(
                kernel,
                out_shape=jax.ShapeDtypeStruct((N, Cout, HW), jnp.float32),
                grid=(N,),
                in_specs=[
                    pl.BlockSpec((1, Cin, HW), lambda n: (n, 0, 0)),
                    pl.BlockSpec((9, HW), lambda n: (0, 0)),
                    pl.BlockSpec((Cin, 9 * Cin), lambda n: (0, 0)),
                    pl.BlockSpec((Cin, 1), lambda n: (0, 0)),
                    pl.BlockSpec((Cin, 1), lambda n: (0, 0)),
                    pl.BlockSpec((Cout, Cin), lambda n: (0, 0)),
                    pl.BlockSpec((Cout, 1), lambda n: (0, 0)),
                ],
                out_specs=pl.BlockSpec((1, Cout, HW), lambda n: (n, 0, 0)),
                scratch_shapes=[pltpu.VMEM((9 * Cin, HW), jnp.float32)],
                compiler_params=pltpu.CompilerParams(
                    dimension_semantics=("parallel",)),
            )(x, masks, self.ext_w_mat, scale, bias, wh, bh)
        else:
            out = pl.pallas_call(
                _head_only_kernel,
                out_shape=jax.ShapeDtypeStruct((N, Cout, HW), jnp.float32),
                grid=(N,),
                in_specs=[
                    pl.BlockSpec((1, Cin, HW), lambda n: (n, 0, 0)),
                    pl.BlockSpec((Cout, Cin), lambda n: (0, 0)),
                    pl.BlockSpec((Cout, 1), lambda n: (0, 0)),
                ],
                out_specs=pl.BlockSpec((1, Cout, HW), lambda n: (n, 0, 0)),
                compiler_params=pltpu.CompilerParams(
                    dimension_semantics=("parallel",)),
            )(x, wh, bh)

        return out.reshape(N, Cout, H, W)      # free reshape back to NCHW

    # ---- pure-JAX reference (for validation only) --------------------------
    def reference(self, x_nchw):
        x = x_nchw.astype(jnp.float32)
        Cin, Cout = self.in_channels, self.out_channels
        dn = ('NCHW', 'OIHW', 'NCHW')
        if self.has_ext:
            y = lax.conv_general_dilated(x, self.ext_w_oihw, (1, 1), 'SAME',
                                         dimension_numbers=dn,
                                         precision=lax.Precision.HIGHEST)
            scale = self.bn_gamma / jnp.sqrt(self.bn_var + self.bn_eps)
            bias = self.bn_beta - self.bn_mean * scale
            x = jnp.maximum(y * scale.reshape(1, Cin, 1, 1)
                            + bias.reshape(1, Cin, 1, 1), 0.0)
        w = self.head_w.reshape(Cout, Cin, 1, 1)
        out = lax.conv_general_dilated(x, w, (1, 1), 'VALID',
                                       dimension_numbers=dn,
                                       precision=lax.Precision.HIGHEST)
        return out + self.head_b.reshape(1, Cout, 1, 1)


# ----------------------------------------------------------------------------
if __name__ == "__main__":
    key = jax.random.PRNGKey(0)
    kx, kp = jax.random.split(key)

    N, Cin, H, W = 2, 4, 16, 16
    Cout = 4
    x = jax.random.normal(kx, (N, Cin, H, W), dtype=jnp.float32)  # NCHW input

    for has_ext in (True, False):
        mod = HeadModulePallas(Cin, Cout, has_ext=has_ext, key=kp)
        out = jax.block_until_ready(mod(x))
        ref = jax.block_until_ready(mod.reference(x))
        assert out.shape == (N, Cout, H, W), out.shape
        np.testing.assert_allclose(np.asarray(out), np.asarray(ref),
                                   rtol=1e-4, atol=1e-4)

    print("KERNEL_OK")
</pallas_src>

<mosaic_0001>
module attributes {stable_mosaic.version = 11 : i64} {
  func.func @_ext_head_kernel(%arg0: i32, %arg1: memref<1x4x256xf32, #tpu.memory_space<vmem>>, %arg2: memref<9x256xf32, #tpu.memory_space<vmem>>, %arg3: memref<4x36xf32, #tpu.memory_space<vmem>>, %arg4: memref<4x1xf32, #tpu.memory_space<vmem>>, %arg5: memref<4x1xf32, #tpu.memory_space<vmem>>, %arg6: memref<4x4xf32, #tpu.memory_space<vmem>>, %arg7: memref<4x1xf32, #tpu.memory_space<vmem>>, %arg8: memref<1x4x256xf32, #tpu.memory_space<vmem>>, %arg9: memref<36x256xf32, #tpu.memory_space<vmem>>) attributes {dimension_semantics = [#tpu.dimension_semantics<parallel>], iteration_bounds = array<i64: 2>, scalar_prefetch = 0 : i64, scratch_operands = 1 : i64, tpu.core_type = #tpu.core_type<tc>, window_params = [{transform_indices = @transform_0, window_bounds = array<i64: 1, 4, 256>}, {pipeline_mode = #tpu.pipeline_mode<synchronous>, transform_indices = @transform_1, window_bounds = array<i64: 9, 256>}, {pipeline_mode = #tpu.pipeline_mode<synchronous>, transform_indices = @transform_2, window_bounds = array<i64: 4, 36>}, {pipeline_mode = #tpu.pipeline_mode<synchronous>, transform_indices = @transform_3, window_bounds = array<i64: 4, 1>}, {pipeline_mode = #tpu.pipeline_mode<synchronous>, transform_indices = @transform_4, window_bounds = array<i64: 4, 1>}, {pipeline_mode = #tpu.pipeline_mode<synchronous>, transform_indices = @transform_5, window_bounds = array<i64: 4, 4>}, {pipeline_mode = #tpu.pipeline_mode<synchronous>, transform_indices = @transform_6, window_bounds = array<i64: 4, 1>}, {transform_indices = @transform_7, window_bounds = array<i64: 1, 4, 256>}]} {
    %c0 = arith.constant 0 : index
    %c0_0 = arith.constant 0 : index
    %c0_1 = arith.constant 0 : index
    %0 = vector.load %arg1[%c0, %c0_0, %c0_1] : memref<1x4x256xf32, #tpu.memory_space<vmem>>, vector<1x4x256xf32>
    %1 = vector.shape_cast %0 : vector<1x4x256xf32> to vector<4x256xf32>
    %c17_i32 = arith.constant 17 : i32
    %2 = tpu.dynamic_rotate %1 by %c17_i32 dim 1 : vector<4x256xf32>, i32 -> vector<4x256xf32>
    %c0_2 = arith.constant 0 : index
    %c0_3 = arith.constant 0 : index
    %3 = vector.load %arg2[%c0_2, %c0_3] : memref<9x256xf32, #tpu.memory_space<vmem>>, vector<1x256xf32>
    %4 = vector.broadcast %3 : vector<1x256xf32> to vector<4x256xf32>
    %5 = arith.mulf %2, %4 : vector<4x256xf32>
    %c0_4 = arith.constant 0 : index
    %c0_5 = arith.constant 0 : index
    %6 = vector.load %arg9[%c0_4, %c0_5] : memref<36x256xf32, #tpu.memory_space<vmem>>, vector<4x256xf32>
    tpu.vector_store %arg9[%c0_4, %c0_5], %5 {strides = array<i32>} : memref<36x256xf32, #tpu.memory_space<vmem>>, vector<4x256xf32>,
    %c16_i32 = arith.constant 16 : i32
    %7 = tpu.dynamic_rotate %1 by %c16_i32 dim 1 : vector<4x256xf32>, i32 -> vector<4x256xf32>
    %c1 = arith.constant 1 : index
    %c0_6 = arith.constant 0 : index
    %8 = vector.load %arg2[%c1, %c0_6] : memref<9x256xf32, #tpu.memory_space<vmem>>, vector<1x256xf32>
    %9 = vector.broadcast %8 : vector<1x256xf32> to vector<4x256xf32>
    %10 = arith.mulf %7, %9 : vector<4x256xf32>
    %c4 = arith.constant 4 : index
    %c0_7 = arith.constant 0 : index
    %11 = vector.load %arg9[%c4, %c0_7] : memref<36x256xf32, #tpu.memory_space<vmem>>, vector<4x256xf32>
    tpu.vector_store %arg9[%c4, %c0_7], %10 {strides = array<i32>} : memref<36x256xf32, #tpu.memory_space<vmem>>, vector<4x256xf32>,
    %c15_i32 = arith.constant 15 : i32
    %12 = tpu.dynamic_rotate %1 by %c15_i32 dim 1 : vector<4x256xf32>, i32 -> vector<4x256xf32>
    %c2 = arith.constant 2 : index
    %c0_8 = arith.constant 0 : index
    %13 = vector.load %arg2[%c2, %c0_8] : memref<9x256xf32, #tpu.memory_space<vmem>>, vector<1x256xf32>
    %14 = vector.broadcast %13 : vector<1x256xf32> to vector<4x256xf32>
    %15 = arith.mulf %12, %14 : vector<4x256xf32>
    %c8 = arith.constant 8 : index
    %c0_9 = arith.constant 0 : index
    %16 = vector.load %arg9[%c8, %c0_9] : memref<36x256xf32, #tpu.memory_space<vmem>>, vector<4x256xf32>
    tpu.vector_store %arg9[%c8, %c0_9], %15 {strides = array<i32>} : memref<36x256xf32, #tpu.memory_space<vmem>>, vector<4x256xf32>,
    %c1_i32 = arith.constant 1 : i32
    %17 = tpu.dynamic_rotate %1 by %c1_i32 dim 1 : vector<4x256xf32>, i32 -> vector<4x256xf32>
    %c3 = arith.constant 3 : index
    %c0_10 = arith.constant 0 : index
    %18 = vector.load %arg2[%c3, %c0_10] : memref<9x256xf32, #tpu.memory_space<vmem>>, vector<1x256xf32>
    %19 = vector.broadcast %18 : vector<1x256xf32> to vector<4x256xf32>
    %20 = arith.mulf %17, %19 : vector<4x256xf32>
    %c12 = arith.constant 12 : index
    %c0_11 = arith.constant 0 : index
    %21 = vector.load %arg9[%c12, %c0_11] : memref<36x256xf32, #tpu.memory_space<vmem>>, vector<4x256xf32>
    tpu.vector_store %arg9[%c12, %c0_11], %20 {strides = array<i32>} : memref<36x256xf32, #tpu.memory_space<vmem>>, vector<4x256xf32>,
    %c16 = arith.constant 16 : index
    %c0_12 = arith.constant 0 : index
    %22 = vector.load %arg9[%c16, %c0_12] : memref<36x256xf32, #tpu.memory_space<vmem>>, vector<4x256xf32>
    tpu.vector_store %arg9[%c16, %c0_12], %1 {strides = array<i32>} : memref<36x256xf32, #tpu.memory_space<vmem>>, vector<4x256xf32>,
    %c255_i32 = arith.constant 255 : i32
    %23 = tpu.dynamic_rotate %1 by %c255_i32 dim 1 : vector<4x256xf32>, i32 -> vector<4x256xf32>
    %c5 = arith.constant 5 : index
    %c0_13 = arith.constant 0 : index
    %24 = vector.load %arg2[%c5, %c0_13] : memref<9x256xf32, #tpu.memory_space<vmem>>, vector<1x256xf32>
    %25 = vector.broadcast %24 : vector<1x256xf32> to vector<4x256xf32>
    %26 = arith.mulf %23, %25 : vector<4x256xf32>
    %c20 = arith.constant 20 : index
    %c0_14 = arith.constant 0 : index
    %27 = vector.load %arg9[%c20, %c0_14] : memref<36x256xf32, #tpu.memory_space<vmem>>, vector<4x256xf32>
    tpu.vector_store %arg9[%c20, %c0_14], %26 {strides = array<i32>} : memref<36x256xf32, #tpu.memory_space<vmem>>, vector<4x256xf32>,
    %c241_i32 = arith.constant 241 : i32
    %28 = tpu.dynamic_rotate %1 by %c241_i32 dim 1 : vector<4x256xf32>, i32 -> vector<4x256xf32>
    %c6 = arith.constant 6 : index
    %c0_15 = arith.constant 0 : index
    %29 = vector.load %arg2[%c6, %c0_15] : memref<9x256xf32, #tpu.memory_space<vmem>>, vector<1x256xf32>
    %30 = vector.broadcast %29 : vector<1x256xf32> to vector<4x256xf32>
    %31 = arith.mulf %28, %30 : vector<4x256xf32>
    %c24 = arith.constant 24 : index
    %c0_16 = arith.constant 0 : index
    %32 = vector.load %arg9[%c24, %c0_16] : memref<36x256xf32, #tpu.memory_space<vmem>>, vector<4x256xf32>
    tpu.vector_store %arg9[%c24, %c0_16], %31 {strides = array<i32>} : memref<36x256xf32, #tpu.memory_space<vmem>>, vector<4x256xf32>,
    %c240_i32 = arith.constant 240 : i32
    %33 = tpu.dynamic_rotate %1 by %c240_i32 dim 1 : vector<4x256xf32>, i32 -> vector<4x256xf32>
    %c7 = arith.constant 7 : index
    %c0_17 = arith.constant 0 : index
    %34 = vector.load %arg2[%c7, %c0_17] : memref<9x256xf32, #tpu.memory_space<vmem>>, vector<1x256xf32>
    %35 = vector.broadcast %34 : vector<1x256xf32> to vector<4x256xf32>
    %36 = arith.mulf %33, %35 : vector<4x256xf32>
    %c28 = arith.constant 28 : index
    %c0_18 = arith.constant 0 : index
    %37 = vector.load %arg9[%c28, %c0_18] : memref<36x256xf32, #tpu.memory_space<vmem>>, vector<4x256xf32>
    tpu.vector_store %arg9[%c28, %c0_18], %36 {strides = array<i32>} : memref<36x256xf32, #tpu.memory_space<vmem>>, vector<4x256xf32>,
    %c239_i32 = arith.constant 239 : i32
    %38 = tpu.dynamic_rotate %1 by %c239_i32 dim 1 : vector<4x256xf32>, i32 -> vector<4x256xf32>
    %c8_19 = arith.constant 8 : index
    %c0_20 = arith.constant 0 : index
    %39 = vector.load %arg2[%c8_19, %c0_20] : memref<9x256xf32, #tpu.memory_space<vmem>>, vector<1x256xf32>
    %40 = vector.broadcast %39 : vector<1x256xf32> to vector<4x256xf32>
    %41 = arith.mulf %38, %40 : vector<4x256xf32>
    %c32 = arith.constant 32 : index
    %c0_21 = arith.constant 0 : index
    %42 = vector.load %arg9[%c32, %c0_21] : memref<36x256xf32, #tpu.memory_space<vmem>>, vector<4x256xf32>
    tpu.vector_store %arg9[%c32, %c0_21], %41 {strides = array<i32>} : memref<36x256xf32, #tpu.memory_space<vmem>>, vector<4x256xf32>,
    %c0_22 = arith.constant 0 : index
    %c0_23 = arith.constant 0 : index
    %43 = vector.load %arg3[%c0_22, %c0_23] : memref<4x36xf32, #tpu.memory_space<vmem>>, vector<4x36xf32>
    %c0_24 = arith.constant 0 : index
    %c0_25 = arith.constant 0 : index
    %44 = vector.load %arg9[%c0_24, %c0_25] : memref<36x256xf32, #tpu.memory_space<vmem>>, vector<36x256xf32>
    %cst = arith.constant dense<0.000000e+00> : vector<4x256xf32>
    %45 = tpu.matmul %43, %44, %cst {dimension_numbers = #tpu.dot_dimension_numbers<[1], [0], [0], [1], [0, 0, 1, 1], [], []>} : vector<4x36xf32>, vector<36x256xf32>, vector<4x256xf32> -> vector<4x256xf32>
    %c0_26 = arith.constant 0 : index
    %c0_27 = arith.constant 0 : index
    %46 = vector.load %arg4[%c0_26, %c0_27] : memref<4x1xf32, #tpu.memory_space<vmem>>, vector<4x1xf32>
    %47 = vector.broadcast %46 : vector<4x1xf32> to vector<4x256xf32>
    %48 = arith.mulf %45, %47 : vector<4x256xf32>
    %c0_28 = arith.constant 0 : index
    %c0_29 = arith.constant 0 : index
    %49 = vector.load %arg5[%c0_28, %c0_29] : memref<4x1xf32, #tpu.memory_space<vmem>>, vector<4x1xf32>
    %50 = vector.broadcast %49 : vector<4x1xf32> to vector<4x256xf32>
    %51 = arith.addf %48, %50 : vector<4x256xf32>
    %cst_30 = arith.constant 0.000000e+00 : f32
    %52 = vector.broadcast %cst_30 : f32 to vector<4x256xf32>
    %53 = arith.maximumf %51, %52 : vector<4x256xf32>
    %c0_31 = arith.constant 0 : index
    %c0_32 = arith.constant 0 : index
    %54 = vector.load %arg6[%c0_31, %c0_32] : memref<4x4xf32, #tpu.memory_space<vmem>>, vector<4x4xf32>
    %cst_33 = arith.constant dense<0.000000e+00> : vector<4x256xf32>
    %55 = tpu.matmul %54, %53, %cst_33 {dimension_numbers = #tpu.dot_dimension_numbers<[1], [0], [0], [1], [0, 0, 1, 1], [], []>} : vector<4x4xf32>, vector<4x256xf32>, vector<4x256xf32> -> vector<4x256xf32>
    %c0_34 = arith.constant 0 : index
    %c0_35 = arith.constant 0 : index
    %56 = vector.load %arg7[%c0_34, %c0_35] : memref<4x1xf32, #tpu.memory_space<vmem>>, vector<4x1xf32>
    %57 = vector.broadcast %56 : vector<4x1xf32> to vector<4x256xf32>
    %58 = arith.addf %55, %57 : vector<4x256xf32>
    %c0_36 = arith.constant 0 : index
    %c0_37 = arith.constant 0 : index
    %c0_38 = arith.constant 0 : index
    %59 = vector.load %arg8[%c0_36, %c0_37, %c0_38] : memref<1x4x256xf32, #tpu.memory_space<vmem>>, vector<1x4x256xf32>
    %60 = vector.shape_cast %59 : vector<1x4x256xf32> to vector<4x256xf32>
    %61 = vector.shape_cast %58 : vector<4x256xf32> to vector<1x4x256xf32>
    tpu.vector_store %arg8[%c0_36, %c0_37, %c0_38], %61 {strides = array<i32>} : memref<1x4x256xf32, #tpu.memory_space<vmem>>, vector<1x4x256xf32>,
    return
  }
  func.func @transform_0(%arg0: i32) -> (i32, i32, i32) {
    %c0_i32 = arith.constant 0 : i32
    %c0_i32_0 = arith.constant 0 : i32
    %c0_i32_1 = arith.constant 0 : i32
    return %arg0, %c0_i32, %c0_i32_0 : i32, i32, i32
  }
  func.func @transform_1(%arg0: i32) -> (i32, i32) {
    %c0_i32 = arith.constant 0 : i32
    %c0_i32_0 = arith.constant 0 : i32
    %c0_i32_1 = arith.constant 0 : i32
    return %c0_i32, %c0_i32_0 : i32, i32
  }
  func.func @transform_2(%arg0: i32) -> (i32, i32) {
    %c0_i32 = arith.constant 0 : i32
    %c0_i32_0 = arith.constant 0 : i32
    %c0_i32_1 = arith.constant 0 : i32
    return %c0_i32, %c0_i32_0 : i32, i32
  }
  func.func @transform_3(%arg0: i32) -> (i32, i32) {
    %c0_i32 = arith.constant 0 : i32
    %c0_i32_0 = arith.constant 0 : i32
    %c0_i32_1 = arith.constant 0 : i32
    return %c0_i32, %c0_i32_0 : i32, i32
  }
  func.func @transform_4(%arg0: i32) -> (i32, i32) {
    %c0_i32 = arith.constant 0 : i32
    %c0_i32_0 = arith.constant 0 : i32
    %c0_i32_1 = arith.constant 0 : i32
    return %c0_i32, %c0_i32_0 : i32, i32
  }
  func.func @transform_5(%arg0: i32) -> (i32, i32) {
    %c0_i32 = arith.constant 0 : i32
    %c0_i32_0 = arith.constant 0 : i32
    %c0_i32_1 = arith.constant 0 : i32
    return %c0_i32, %c0_i32_0 : i32, i32
  }
  func.func @transform_6(%arg0: i32) -> (i32, i32) {
    %c0_i32 = arith.constant 0 : i32
    %c0_i32_0 = arith.constant 0 : i32
    %c0_i32_1 = arith.constant 0 : i32
    return %c0_i32, %c0_i32_0 : i32, i32
  }
  func.func @transform_7(%arg0: i32) -> (i32, i32, i32) {
    %c0_i32 = arith.constant 0 : i32
    %c0_i32_0 = arith.constant 0 : i32
    %c0_i32_1 = arith.constant 0 : i32
    return %arg0, %c0_i32, %c0_i32_0 : i32, i32, i32
  }
}

</mosaic_0001>

<llo_original>
// kernel: tpu_custom_call.1
$region0: #{tpu_custom_call.1}
  #allocation0 [shape = 'u32[]', space=smem, size = 0x4, offset = 0x4, fixed_abs, tag = 'smem constant byte address 0x4 - core index']
  #allocation1 [shape = 'u32[144,128]{1,0:T(1,128)}', space=vmem, size = 0x12000, scoped, tag = 'internal scratch']
  #allocation2 [shape = 'f32[36,256]{1,0:T(8,128)}', space=vmem, size = 0xa000, scoped, tag = 'scratch operand']
  %s0 = inlined_call_operand.hbm [shape: f32[2,4,256], index: 0, kind: input, shape index: {}]
  %s1 = inlined_call_operand.hbm [shape: f32[9,256], index: 1, kind: input, shape index: {}]
  %s2 = inlined_call_operand.vmem [shape: f32[4,36], index: 2, kind: input, shape index: {}]
  %s3 = inlined_call_operand.vmem [shape: f32[4,1], index: 3, kind: input, shape index: {}]
  %s4 = inlined_call_operand.vmem [shape: f32[4,1], index: 4, kind: input, shape index: {}]
  %s5 = inlined_call_operand.vmem [shape: f32[4,4], index: 5, kind: input, shape index: {}]
  %s6 = inlined_call_operand.vmem [shape: f32[4,1], index: 6, kind: input, shape index: {}]
  %s7 = inlined_call_operand.hbm [shape: f32[2,4,256], index: 7, kind: output, shape index: {}]
  %s8 = sld [smem:[#allocation0]]
  $region69: #{tpu_custom_call.1} parent=0
    _
  %s10 = ssub.s32 1, %s8
  %s11 = scalar_select 0, %s10, %s8
  $region1: #{tpu_custom_call.1} parent=0
    #allocation3 [shape = 'u8[8192]{0}', space=vmem, size = 0x2000, scoped, tag = 'input window, operand 0']
    #allocation4 [shape = 's32[2]{0}', space=sflag, size = 0x8, scoped, tag = 'scoped memory for tpu_custom_call.1']
    #allocation5 [shape = 's32[2]{0}', space=sflag, size = 0x8, scoped, tag = 'scoped memory for tpu_custom_call.1']
    #allocation6 [shape = 'u8[16384]{0}', space=vmem, size = 0x4000, scoped, tag = 'input window, operand 1, single buffered']
    #allocation7 [shape = 's32[1]{0}', space=sflag, size = 0x4, scoped, tag = 'scoped memory for tpu_custom_call.1']
    #allocation8 [shape = 'u8[8192]{0}', space=vmem, size = 0x2000, scoped, tag = 'output window, operand 0']
    %12 = vsyncpa [#allocation4], 0
    %s13 = scalar_lea.sflag [#allocation4], 1
    %14 = vsyncpa %s13, 0
    %15 = vsyncpa [#allocation7], 0
    %16 = vsyncpa [#allocation5], 0
    %s17 = scalar_lea.sflag [#allocation5], 1
    %18 = vsyncpa %s17, 0
    loop: start=0, step=1, limit=4
    $region2: #{tpu_custom_call.1} parent=1 // loop_pre_header
      _
    $region3: #{tpu_custom_call.1} parent=1 // loop_header
      %s20 = sphi 0, %s24
      %p21 = scmp.ge.s32.totalorder %s20, 4
      %s30 = sphi 0, %s32
      %s33 = sphi 0, %s30
      %s34 = sphi 0, %s33
      %s50 = sphi 0, %s34
      %s54 = sphi 0, %s54
      %s56 = sphi 0, %s54
      %s57 = sphi 0, %s56
      %s71 = sphi 0, %s57
      %s75 = sphi 0, %s75
      %s77 = sphi 0, %s75
      %s78 = sphi 0, %s77
      %s92 = sphi 0, %s78
      %s96 = sphi 0, %s96
      %s98 = sphi 0, %s96
      %s99 = sphi 0, %s98
      %s113 = sphi 0, %s99
      %s117 = sphi 0, %s117
      %s119 = sphi 0, %s117
      %s120 = sphi 0, %s119
      %s134 = sphi 0, %s120
      %s138 = sphi 0, %s138
      %s140 = sphi 0, %s138
      %s141 = sphi 0, %s140
      %s155 = sphi 0, %s141
      %s159 = sphi 0, %s159
      %s161 = sphi 0, %s159
      %s162 = sphi 0, %s161
      %s176 = sphi 0, %s162
      %s182 = sphi 0, %s184
      %s185 = sphi 0, %s182
      %s186 = sphi 0, %s185
      %s202 = sphi 0, %s186
    $region4: #{tpu_custom_call.1} parent=1 // loop_header_branch
      %23 = sbr.rel (%p21) target = $region8
    $region5: #{tpu_custom_call.1} parent=1 // loop_body
      %s25 = ssub.s32 %s20, 1
      %s26 = ssub.s32 %s20, 2
      %s27 = sadd.s32 %s20, 1
      %s28 = ssub.s32 %s20, %s27
      %p29 = scmp.eq.s32.totalorder %s28, 0
      %s31 = sadd.s32 %s30, 1
      %s32 = scalar_select %p29, %s30, %s31
      %p35 = pneg %p29
      %p36 = scmp.eq.s32.totalorder %s20, 1
      %p37 = por %p35, %p36
      %p38 = scmp.ne.s32.totalorder %s30, %s33
      %p39 = scmp.eq.s32.totalorder %s20, 0
      %p40 = por %p38, %p39
      %p41 = scmp.ne.s32.totalorder %s30, %s33
      %p42 = scmp.eq.s32.totalorder %s25, 1
      %p43 = por %p41, %p42
      %p44 = scmp.ne.s32.totalorder %s33, %s34
      %p45 = scmp.eq.s32.totalorder %s25, 0
      %p46 = por %p44, %p45
      %p47 = scmp.ne.s32.totalorder %s33, %s34
      %p48 = scmp.eq.s32.totalorder %s26, 1
      %p49 = por %p47, %p48
      %p51 = scmp.ne.s32.totalorder %s34, %s50
      %p52 = scmp.eq.s32.totalorder %s26, 0
      %p53 = por %p51, %p52
      %s55 = sadd.s32 %s54, 1
      %p58 = scmp.eq.s32.totalorder %s20, 1
      %p59 = scmp.ne.s32.totalorder %s54, %s56
      %p60 = scmp.eq.s32.totalorder %s20, 0
      %p61 = por %p59, %p60
      %p62 = scmp.ne.s32.totalorder %s54, %s56
      %p63 = scmp.eq.s32.totalorder %s25, 1
      %p64 = por %p62, %p63
      %p65 = scmp.ne.s32.totalorder %s56, %s57
      %p66 = scmp.eq.s32.totalorder %s25, 0
      %p67 = por %p65, %p66
      %p68 = scmp.ne.s32.totalorder %s56, %s57
      %p69 = scmp.eq.s32.totalorder %s26, 1
      %p70 = por %p68, %p69
      %p72 = scmp.ne.s32.totalorder %s57, %s71
      %p73 = scmp.eq.s32.totalorder %s26, 0
      %p74 = por %p72, %p73
      %s76 = sadd.s32 %s75, 1
      %p79 = scmp.eq.s32.totalorder %s20, 1
      %p80 = scmp.ne.s32.totalorder %s75, %s77
      %p81 = scmp.eq.s32.totalorder %s20, 0
      %p82 = por %p80, %p81
      %p83 = scmp.ne.s32.totalorder %s75, %s77
      %p84 = scmp.eq.s32.totalorder %s25, 1
      %p85 = por %p83, %p84
      %p86 = scmp.ne.s32.totalorder %s77, %s78
      %p87 = scmp.eq.s32.totalorder %s25, 0
      %p88 = por %p86, %p87
      %p89 = scmp.ne.s32.totalorder %s77, %s78
      %p90 = scmp.eq.s32.totalorder %s26, 1
      %p91 = por %p89, %p90
      %p93 = scmp.ne.s32.totalorder %s78, %s92
      %p94 = scmp.eq.s32.totalorder %s26, 0
      %p95 = por %p93, %p94
      %s97 = sadd.s32 %s96, 1
      %p100 = scmp.eq.s32.totalorder %s20, 1
      %p101 = scmp.ne.s32.totalorder %s96, %s98
      %p102 = scmp.eq.s32.totalorder %s20, 0
      %p103 = por %p101, %p102
      %p104 = scmp.ne.s32.totalorder %s96, %s98
      %p105 = scmp.eq.s32.totalorder %s25, 1
      %p106 = por %p104, %p105
      %p107 = scmp.ne.s32.totalorder %s98, %s99
      %p108 = scmp.eq.s32.totalorder %s25, 0
      %p109 = por %p107, %p108
      %p110 = scmp.ne.s32.totalorder %s98, %s99
      %p111 = scmp.eq.s32.totalorder %s26, 1
      %p112 = por %p110, %p111
      %p114 = scmp.ne.s32.totalorder %s99, %s113
      %p115 = scmp.eq.s32.totalorder %s26, 0
      %p116 = por %p114, %p115
      %s118 = sadd.s32 %s117, 1
      %p121 = scmp.eq.s32.totalorder %s20, 1
      %p122 = scmp.ne.s32.totalorder %s117, %s119
      %p123 = scmp.eq.s32.totalorder %s20, 0
      %p124 = por %p122, %p123
      %p125 = scmp.ne.s32.totalorder %s117, %s119
      %p126 = scmp.eq.s32.totalorder %s25, 1
      %p127 = por %p125, %p126
      %p128 = scmp.ne.s32.totalorder %s119, %s120
      %p129 = scmp.eq.s32.totalorder %s25, 0
      %p130 = por %p128, %p129
      %p131 = scmp.ne.s32.totalorder %s119, %s120
      %p132 = scmp.eq.s32.totalorder %s26, 1
      %p133 = por %p131, %p132
      %p135 = scmp.ne.s32.totalorder %s120, %s134
      %p136 = scmp.eq.s32.totalorder %s26, 0
      %p137 = por %p135, %p136
      %s139 = sadd.s32 %s138, 1
      %p142 = scmp.eq.s32.totalorder %s20, 1
      %p143 = scmp.ne.s32.totalorder %s138, %s140
      %p144 = scmp.eq.s32.totalorder %s20, 0
      %p145 = por %p143, %p144
      %p146 = scmp.ne.s32.totalorder %s138, %s140
      %p147 = scmp.eq.s32.totalorder %s25, 1
      %p148 = por %p146, %p147
      %p149 = scmp.ne.s32.totalorder %s140, %s141
      %p150 = scmp.eq.s32.totalorder %s25, 0
      %p151 = por %p149, %p150
      %p152 = scmp.ne.s32.totalorder %s140, %s141
      %p153 = scmp.eq.s32.totalorder %s26, 1
      %p154 = por %p152, %p153
      %p156 = scmp.ne.s32.totalorder %s141, %s155
      %p157 = scmp.eq.s32.totalorder %s26, 0
      %p158 = por %p156, %p157
      %s160 = sadd.s32 %s159, 1
      %p163 = scmp.eq.s32.totalorder %s20, 1
      %p164 = scmp.ne.s32.totalorder %s159, %s161
      %p165 = scmp.eq.s32.totalorder %s20, 0
      %p166 = por %p164, %p165
      %p167 = scmp.ne.s32.totalorder %s159, %s161
      %p168 = scmp.eq.s32.totalorder %s25, 1
      %p169 = por %p167, %p168
      %p170 = scmp.ne.s32.totalorder %s161, %s162
      %p171 = scmp.eq.s32.totalorder %s25, 0
      %p172 = por %p170, %p171
      %p173 = scmp.ne.s32.totalorder %s161, %s162
      %p174 = scmp.eq.s32.totalorder %s26, 1
      %p175 = por %p173, %p174
      %p177 = scmp.ne.s32.totalorder %s162, %s176
      %p178 = scmp.eq.s32.totalorder %s26, 0
      %p179 = por %p177, %p178
      %s180 = ssub.s32 %s20, %s27
      %p181 = scmp.eq.s32.totalorder %s180, 0
      %s183 = sadd.s32 %s182, 1
      %s184 = scalar_select %p181, %s182, %s183
      %p187 = pneg %p181
      %p188 = scmp.eq.s32.totalorder %s20, 1
      %p189 = por %p187, %p188
      %p190 = scmp.ne.s32.totalorder %s182, %s185
      %p191 = scmp.eq.s32.totalorder %s20, 0
      %p192 = por %p190, %p191
      %p193 = scmp.ne.s32.totalorder %s182, %s185
      %p194 = scmp.eq.s32.totalorder %s25, 1
      %p195 = por %p193, %p194
      %p196 = scmp.ne.s32.totalorder %s185, %s186
      %p197 = scmp.eq.s32.totalorder %s25, 0
      %p198 = por %p196, %p197
      %p199 = scmp.ne.s32.totalorder %s185, %s186
      %p200 = scmp.eq.s32.totalorder %s26, 1
      %p201 = por %p199, %p200
      %p203 = scmp.ne.s32.totalorder %s186, %s202
      %p204 = scmp.eq.s32.totalorder %s26, 0
      %p205 = por %p203, %p204
      %p206 = scmp.le.s32.totalorder 1, %s20
      %p207 = scmp.lt.s32.totalorder %s20, 3
      %p208 = pnand %p206, %p207
      %p209 = pneg %p208
      // Predicated region
      $region9: #{tpu_custom_call.1} parent=5 // pred_check
        _
      $region10: #{tpu_custom_call.1} parent=5 // pred_check_branch
        %211 = sbr.rel (%p208) target = $region12
      $region11: #{tpu_custom_call.1} parent=5 // pred_region
        %s212 = ssub.s32 %s20, 1
        // Predicated region
        $region13: #{tpu_custom_call.1} parent=11 // pred_check
          %p213 = pneg %p67
        $region14: #{tpu_custom_call.1} parent=11 // pred_check_branch
          %215 = sbr.rel (%p213) target = $region16
        $region15: #{tpu_custom_call.1} parent=11 // pred_region
          %s217 = ssub.s32 512, 512
          %218 = vsyncadd [#allocation7], %s217
          %s219 = sshll.u32 [#allocation6], 4
          %s220 = int_to_ptr.vmem [resolvable:$true] %s219
          %225 = dma.hbm_to_vmem [thread:$0]  %s1, 512, %s220, [#allocation7], 256, 256, 16
        $region16: #{tpu_custom_call.1} parent=11 // pred_fallthru
          _
        // Predicated region
        $region17: #{tpu_custom_call.1} parent=11 // pred_check
          %p226 = pneg %p88
        $region18: #{tpu_custom_call.1} parent=11 // pred_check_branch
          %228 = sbr.rel (%p226) target = $region20
        $region19: #{tpu_custom_call.1} parent=11 // pred_region
          _
        $region20: #{tpu_custom_call.1} parent=11 // pred_fallthru
          _
        // Predicated region
        $region21: #{tpu_custom_call.1} parent=11 // pred_check
          %p229 = pneg %p109
        $region22: #{tpu_custom_call.1} parent=11 // pred_check_branch
          %231 = sbr.rel (%p229) target = $region24
        $region23: #{tpu_custom_call.1} parent=11 // pred_region
          _
        $region24: #{tpu_custom_call.1} parent=11 // pred_fallthru
          _
        // Predicated region
        $region25: #{tpu_custom_call.1} parent=11 // pred_check
          %p232 = pneg %p130
        $region26: #{tpu_custom_call.1} parent=11 // pred_check_branch
          %234 = sbr.rel (%p232) target = $region28
        $region27: #{tpu_custom_call.1} parent=11 // pred_region
          _
        $region28: #{tpu_custom_call.1} parent=11 // pred_fallthru
          _
        // Predicated region
        $region29: #{tpu_custom_call.1} parent=11 // pred_check
          %p235 = pneg %p151
        $region30: #{tpu_custom_call.1} parent=11 // pred_check_branch
          %237 = sbr.rel (%p235) target = $region32
        $region31: #{tpu_custom_call.1} parent=11 // pred_region
          _
        $region32: #{tpu_custom_call.1} parent=11 // pred_fallthru
          _
        // Predicated region
        $region33: #{tpu_custom_call.1} parent=11 // pred_check
          %p238 = pneg %p172
        $region34: #{tpu_custom_call.1} parent=11 // pred_check_branch
          %240 = sbr.rel (%p238) target = $region36
        $region35: #{tpu_custom_call.1} parent=11 // pred_region
          _
        $region36: #{tpu_custom_call.1} parent=11 // pred_fallthru
          _
      $region12: #{tpu_custom_call.1} parent=5 // pred_fallthru
        _
      %p241 = scmp.lt.s32.totalorder %s20, 2
      // Predicated region
      $region37: #{tpu_custom_call.1} parent=5 // pred_check
        %p242 = pneg %p241
      $region38: #{tpu_custom_call.1} parent=5 // pred_check_branch
        %244 = sbr.rel (%p242) target = $region40
      $region39: #{tpu_custom_call.1} parent=5 // pred_region
        // Predicated region
        $region41: #{tpu_custom_call.1} parent=39 // pred_check
          %p245 = pneg %p40
        $region42: #{tpu_custom_call.1} parent=39 // pred_check_branch
          %247 = sbr.rel (%p245) target = $region44
        $region43: #{tpu_custom_call.1} parent=39 // pred_region
          %s248 = sand.u32 %s30, 1
          %s249 = scalar_lea.sflag [#allocation4], %s248
          %s250 = sand.u32 %s30, 1
          %s251 = smul.addr %s250, 8
          %s252 = scalar_lea.vmem [#allocation3], %s251
          %s254 = ssub.s32 128, 128
          %255 = vsyncadd %s249, %s254
          %s256 = smul.addr %s20, 2
          %s257 = smul.addr %s256, 64
          %s258 = scalar_lea.hbm %s0, %s257
          %s260 = sshll.u32 %s252, 4
          %s261 = int_to_ptr.vmem [resolvable:$true] %s260
          %263 = dma.hbm_to_vmem [thread:$0]  %s258, 128, %s261, %s249
        $region44: #{tpu_custom_call.1} parent=39 // pred_fallthru
          _
      $region40: #{tpu_custom_call.1} parent=5 // pred_fallthru
        _
      %p264 = scmp.le.s32.totalorder 1, %s20
      %p265 = scmp.lt.s32.totalorder %s20, 3
      %p266 = pnand %p264, %p265
      %p267 = pneg %p266
      // Predicated region
      $region45: #{tpu_custom_call.1} parent=5 // pred_check
        _
      $region46: #{tpu_custom_call.1} parent=5 // pred_check_branch
        %269 = sbr.rel (%p266) target = $region48
      $region47: #{tpu_custom_call.1} parent=5 // pred_region
        %s270 = ssub.s32 %s20, 1
        %s271 = sand.u32 %s33, 1
        %s272 = scalar_lea.sflag [#allocation4], %s271
        %s273 = sand.u32 %s33, 1
        %s274 = smul.addr %s273, 8
        %s275 = scalar_lea.vmem [#allocation3], %s274
        // Predicated region
        $region49: #{tpu_custom_call.1} parent=47 // pred_check
          %p276 = pneg %p46
        $region50: #{tpu_custom_call.1} parent=47 // pred_check_branch
          %278 = sbr.rel (%p276) target = $region52
        $region51: #{tpu_custom_call.1} parent=47 // pred_region
          %279 = dma.done %s272, 128
        $region52: #{tpu_custom_call.1} parent=47 // pred_fallthru
          _
        // Predicated region
        $region53: #{tpu_custom_call.1} parent=47 // pred_check
          %p280 = pneg %p67
        $region54: #{tpu_custom_call.1} parent=47 // pred_check_branch
          %282 = sbr.rel (%p280) target = $region56
        $region55: #{tpu_custom_call.1} parent=47 // pred_region
          %283 = dma.done [#allocation7], 512
        $region56: #{tpu_custom_call.1} parent=47 // pred_fallthru
          _
        %s284 = sand.u32 %s33, 1
        %s285 = scalar_lea.sflag [#allocation4], %s284
        %s286 = sand.u32 %s33, 1
        %s287 = smul.addr %s286, 8
        %s288 = scalar_lea.vmem [#allocation3], %s287
        %p289 = pneg %p46
        %p290 = pneg %p43
        %p291 = pneg %p67
        %p292 = pneg %p64
        %p293 = pneg %p88
        %p294 = pneg %p85
        %p295 = pneg %p109
        %p296 = pneg %p106
        %p297 = pneg %p130
        %p298 = pneg %p127
        %p299 = pneg %p151
        %p300 = pneg %p148
        %p301 = pneg %p172
        %p302 = pneg %p169
        %p303 = pneg %p198
        %p304 = pneg %p195
        %s305 = sand.u32 %s185, 1
        %s306 = scalar_lea.sflag [#allocation5], %s305
        %s307 = sand.u32 %s185, 1
        %s308 = smul.addr %s307, 8
        %s309 = scalar_lea.vmem [#allocation8], %s308
        %v310 = vld [vmem:[%s275] sm:$0xff]
        %v312 = vcombine.high %v310, %v310
        %314 = vrot.lane.b32.xlu0 %v310, 17
        %v315 = vpop.permute.xlu0 %314
        %316 = vrot.lane.b32.xlu0 %v312, 17
        %v317 = vpop.permute.xlu0 %316
        %v318 = vlaneseq
        %v319 = vand.u32 %v318, 127
        %vm320 = vcmp.lt.s32.totalorder %v319, 17
        %v321 = vsel %vm320, %v315, %v317
        %v322 = vsel %vm320, %v317, %v315
        %v323 = vld [vmem:[#allocation6] ss:$8 sm:$0x3]
        %v325 = vlaneseq
        %v326 = vshrl.u32 %v325, 7
        %v327 = vsub.s32 0, %v326
        %v328 = vrot.slane %v323, %v327
        %v329 = vlaneseq
        %v330 = vshrl.u32 %v329, 7
        %v331 = vsub.s32 1, %v330
        %v332 = vrot.slane %v323, %v331
        %v335 = vmul.f32 %v322, %v328
        %v336 = vmul.f32 %v321, %v332
        %337 = vst [vmem:[#allocation2] sm:$0xf] %v335
        %338 = vst [vmem:[#allocation2 + $0x8] sm:$0xf] %v336
        %339 = vrot.lane.b32.xlu0 %v310, 16
        %v340 = vpop.permute.xlu0 %339
        %341 = vrot.lane.b32.xlu0 %v312, 16
        %v342 = vpop.permute.xlu0 %341
        %vm343 = vcmp.lt.s32.totalorder %v319, 16
        %v344 = vsel %vm343, %v340, %v342
        %v345 = vsel %vm343, %v342, %v340
        %s346 = scalar_lea.vmem [#allocation6], 1
        %v347 = vld [vmem:[%s346] ss:$8 sm:$0x3]
        %v349 = vlaneseq
        %v350 = vshrl.u32 %v349, 7
        %v351 = vsub.s32 0, %v350
        %v352 = vrot.slane %v347, %v351
        %v353 = vlaneseq
        %v354 = vshrl.u32 %v353, 7
        %v355 = vsub.s32 1, %v354
        %v356 = vrot.slane %v347, %v355
        %v359 = vmul.f32 %v345, %v352
        %v360 = vmul.f32 %v344, %v356
        %v363 = vrot.slane %v359, 4
        %v364 = vrot.slane %v360, 4
        %367 = vst [vmem:[#allocation2] sm:$0xf0] %v363
        %368 = vst [vmem:[#allocation2 + $0x8] sm:$0xf0] %v364
        %369 = vrot.lane.b32.xlu0 %v310, 15
        %v370 = vpop.permute.xlu0 %369
        %371 = vrot.lane.b32.xlu0 %v312, 15
        %v372 = vpop.permute.xlu0 %371
        %vm373 = vcmp.lt.s32.totalorder %v319, 15
        %v374 = vsel %vm373, %v370, %v372
        %v375 = vsel %vm373, %v372, %v370
        %s376 = scalar_lea.vmem [#allocation6], 2
        %v377 = vld [vmem:[%s376] ss:$8 sm:$0x3]
        %v379 = vlaneseq
        %v380 = vshrl.u32 %v379, 7
        %v381 = vsub.s32 0, %v380
        %v382 = vrot.slane %v377, %v381
        %v383 = vlaneseq
        %v384 = vshrl.u32 %v383, 7
        %v385 = vsub.s32 1, %v384
        %v386 = vrot.slane %v377, %v385
        %v389 = vmul.f32 %v375, %v382
        %v390 = vmul.f32 %v374, %v386
        %391 = vst [vmem:[#allocation2 + $0x10] sm:$0xf] %v389
        %392 = vst [vmem:[#allocation2 + $0x18] sm:$0xf] %v390
        %393 = vrot.lane.b32.xlu0 %v310, 1
        %v394 = vpop.permute.xlu0 %393
        %395 = vrot.lane.b32.xlu0 %v312, 1
        %v396 = vpop.permute.xlu0 %395
        %vm397 = vcmp.lt.s32.totalorder %v319, 1
        %v398 = vsel %vm397, %v394, %v396
        %v399 = vsel %vm397, %v396, %v394
        %s400 = scalar_lea.vmem [#allocation6], 3
        %v401 = vld [vmem:[%s400] ss:$8 sm:$0x3]
        %v403 = vlaneseq
        %v404 = vshrl.u32 %v403, 7
        %v405 = vsub.s32 0, %v404
        %v406 = vrot.slane %v401, %v405
        %v407 = vlaneseq
        %v408 = vshrl.u32 %v407, 7
        %v409 = vsub.s32 1, %v408
        %v410 = vrot.slane %v401, %v409
        %v413 = vmul.f32 %v399, %v406
        %v414 = vmul.f32 %v398, %v410
        %v417 = vrot.slane %v413, 4
        %v418 = vrot.slane %v414, 4
        %421 = vst [vmem:[#allocation2 + $0x10] sm:$0xf0] %v417
        %422 = vst [vmem:[#allocation2 + $0x18] sm:$0xf0] %v418
        %423 = vst [vmem:[#allocation2 + $0x20] sm:$0xf] %v310
        %424 = vst [vmem:[#allocation2 + $0x28] sm:$0xf] %v312
        %425 = vrot.lane.b32.xlu0 %v310, 127
        %v426 = vpop.permute.xlu0 %425
        %427 = vrot.lane.b32.xlu0 %v312, 127
        %v428 = vpop.permute.xlu0 %427
        %vm429 = vcmp.lt.s32.totalorder %v319, 127
        %v430 = vsel %vm429, %v426, %v428
        %v431 = vsel %vm429, %v428, %v426
        %s432 = scalar_lea.vmem [#allocation6], 5
        %v433 = vld [vmem:[%s432] ss:$8 sm:$0x3]
        %v435 = vlaneseq
        %v436 = vshrl.u32 %v435, 7
        %v437 = vsub.s32 0, %v436
        %v438 = vrot.slane %v433, %v437
        %v439 = vlaneseq
        %v440 = vshrl.u32 %v439, 7
        %v441 = vsub.s32 1, %v440
        %v442 = vrot.slane %v433, %v441
        %v445 = vmul.f32 %v430, %v438
        %v446 = vmul.f32 %v431, %v442
        %v449 = vrot.slane %v445, 4
        %v450 = vrot.slane %v446, 4
        %453 = vst [vmem:[#allocation2 + $0x20] sm:$0xf0] %v449
        %454 = vst [vmem:[#allocation2 + $0x28] sm:$0xf0] %v450
        %455 = vrot.lane.b32.xlu0 %v310, 113
        %v456 = vpop.permute.xlu0 %455
        %457 = vrot.lane.b32.xlu0 %v312, 113
        %v458 = vpop.permute.xlu0 %457
        %vm459 = vcmp.lt.s32.totalorder %v319, 113
        %v460 = vsel %vm459, %v456, %v458
        %v461 = vsel %vm459, %v458, %v456
        %s462 = scalar_lea.vmem [#allocation6], 6
        %v463 = vld [vmem:[%s462] ss:$8 sm:$0x3]
        %v465 = vlaneseq
        %v466 = vshrl.u32 %v465, 7
        %v467 = vsub.s32 0, %v466
        %v468 = vrot.slane %v463, %v467
        %v469 = vlaneseq
        %v470 = vshrl.u32 %v469, 7
        %v471 = vsub.s32 1, %v470
        %v472 = vrot.slane %v463, %v471
        %v475 = vmul.f32 %v460, %v468
        %v476 = vmul.f32 %v461, %v472
        %477 = vst [vmem:[#allocation2 + $0x30] sm:$0xf] %v475
        %478 = vst [vmem:[#allocation2 + $0x38] sm:$0xf] %v476
        %479 = vrot.lane.b32.xlu0 %v310, 112
        %v480 = vpop.permute.xlu0 %479
        %481 = vrot.lane.b32.xlu0 %v312, 112
        %v482 = vpop.permute.xlu0 %481
        %vm483 = vcmp.lt.s32.totalorder %v319, 112
        %v484 = vsel %vm483, %v480, %v482
        %v485 = vsel %vm483, %v482, %v480
        %s486 = scalar_lea.vmem [#allocation6], 7
        %v487 = vld [vmem:[%s486] ss:$8 sm:$0x3]
        %v489 = vlaneseq
        %v490 = vshrl.u32 %v489, 7
        %v491 = vsub.s32 0, %v490
        %v492 = vrot.slane %v487, %v491
        %v493 = vlaneseq
        %v494 = vshrl.u32 %v493, 7
        %v495 = vsub.s32 1, %v494
        %v496 = vrot.slane %v487, %v495
        %v499 = vmul.f32 %v484, %v492
        %v500 = vmul.f32 %v485, %v496
        %v503 = vrot.slane %v499, 4
        %v504 = vrot.slane %v500, 4
        %507 = vst [vmem:[#allocation2 + $0x30] sm:$0xf0] %v503
        %508 = vst [vmem:[#allocation2 + $0x38] sm:$0xf0] %v504
        %509 = vrot.lane.b32.xlu0 %v310, 111
        %v510 = vpop.permute.xlu0 %509
        %511 = vrot.lane.b32.xlu0 %v312, 111
        %v512 = vpop.permute.xlu0 %511
        %vm513 = vcmp.lt.s32.totalorder %v319, 111
        %v514 = vsel %vm513, %v510, %v512
        %v515 = vsel %vm513, %v512, %v510
        %s516 = scalar_lea.vmem [#allocation6], 16
        %v517 = vld [vmem:[%s516] ss:$8 sm:$0x3]
        %v519 = vlaneseq
        %v520 = vshrl.u32 %v519, 7
        %v521 = vsub.s32 0, %v520
        %v522 = vrot.slane %v517, %v521
        %v523 = vlaneseq
        %v524 = vshrl.u32 %v523, 7
        %v525 = vsub.s32 1, %v524
        %v526 = vrot.slane %v517, %v525
        %v529 = vmul.f32 %v514, %v522
        %v530 = vmul.f32 %v515, %v526
        %531 = vst [vmem:[#allocation2 + $0x40] sm:$0xf] %v529
        %532 = vst [vmem:[#allocation2 + $0x48] sm:$0xf] %v530
        %v533 = vld [vmem:[%s2] sm:$0xf]
        %v534 = vld [vmem:[#allocation2] sm:$0xff]
        %v535 = vld [vmem:[#allocation2 + $0x8] sm:$0xff]
        %v536 = vld [vmem:[#allocation2 + $0x10] sm:$0xff]
        %v537 = vld [vmem:[#allocation2 + $0x18] sm:$0xff]
        %v538 = vld [vmem:[#allocation2 + $0x20] sm:$0xff]
        %v539 = vld [vmem:[#allocation2 + $0x28] sm:$0xff]
        %v540 = vld [vmem:[#allocation2 + $0x30] sm:$0xff]
        %v541 = vld [vmem:[#allocation2 + $0x38] sm:$0xff]
        %v542 = vld [vmem:[#allocation2 + $0x40] sm:$0xf]
        %v543 = vld [vmem:[#allocation2 + $0x48] sm:$0xf]
        %vm544 = vcmask 293888
        %v546 = vsel %vm544, %v533, 0
        %vm548 = vcmask 1043456
        %v550 = vsel %vm548, %v542, 0
        %v553 = vsel %vm548, %v543, 0
        %555 = vmatprep.subr.mxu0 %v535
        %556 = vmatpush1.msra.mxu0 %v534
        %557 = vmatprep.subr.mxu0 %v537
        %558 = vmatpush1.msra.mxu0 %v536
        %559 = vmatprep.subr.mxu0 %v539
        %560 = vmatpush1.msra.mxu0 %v538
        %561 = vmatprep.subr.mxu0 %v541
        %562 = vmatpush1.msra.mxu0 %v540
        %563 = vmatprep.subr.mxu0 %v553
        %564 = vmatpush1.msra.mxu0 %v550
        %565 = vmatprep.subr.mxu0 0.0
        %566 = vmatpush1.msra.mxu0 0.0
        %567 = vmatprep.subr.mxu0 0.0
        %568 = vmatpush1.msra.mxu0 0.0
        %569 = vmatprep.subr.mxu0 0.0
        %570 = vmatpush1.msra.mxu0 0.0
        %571 = vmatprep.subr.mxu0 0.0
        %572 = vmatpush1.msra.mxu0 0.0
        %573 = vmatprep.subr.mxu0 0.0
        %574 = vmatpush1.msra.mxu0 0.0
        %575 = vmatprep.subr.mxu0 0.0
        %576 = vmatpush1.msra.mxu0 0.0
        %577 = vmatprep.subr.mxu0 0.0
        %578 = vmatpush1.msra.mxu0 0.0
        %579 = vmatprep.subr.mxu0 0.0
        %580 = vmatpush1.msra.mxu0 0.0
        %581 = vmatprep.subr.mxu0 0.0
        %582 = vmatpush1.msra.mxu0 0.0
        %583 = vmatprep.subr.mxu0 0.0
        %584 = vmatpush1.msra.mxu0 0.0
        %585 = vmatprep.subr.mxu0 0.0
        %586 = vmatpush1.msra.mxu0 0.0
        %587 = vmatprep.subr.mxu0 0.0
        %588 = vmatpush1.msra.mxu0 0.0
        %589 = vmatprep.subr.mxu0 0.0
        %590 = vmatpush1.msra.mxu0 0.0
        %591 = vmatprep.subr.mxu0 0.0
        %592 = vmatpush1.msra.mxu0 0.0
        %593 = vmatprep.subr.mxu0 0.0
        %594 = vmatpush1.msra.mxu0 0.0
        %595 = vmatprep.subr.mxu0 0.0
        %596 = vmatpush1.msra.mxu0 0.0
        %597 = vmatprep.subr.mxu0 0.0
        %598 = vmatpush1.msra.mxu0 0.0
        %599 = vmatprep.subr.mxu0 0.0
        %600 = vmatpush1.msra.mxu0 0.0
        %601 = vmatprep.subr.mxu0 0.0
        %602 = vmatpush1.msra.mxu0 0.0
        %603 = vmatprep.subr.mxu0 0.0
        %604 = vmatpush1.msra.mxu0 0.0
        %605 = vmatprep.subr.mxu0 0.0
        %606 = vmatpush1.msra.mxu0 0.0
        %607 = vmatprep.subr.mxu0 0.0
        %608 = vmatpush1.msra.mxu0 0.0
        %609 = vmatprep.subr.mxu0 0.0
        %610 = vmatpush1.msra.mxu0 0.0
        %611 = vmatprep.subr.mxu0 0.0
        %612 = vmatpush1.msra.mxu0 0.0
        %613 = vmatprep.subr.mxu0 0.0
        %614 = vmatpush1.msra.mxu0 0.0
        %615 = vmatprep.subr.mxu0 0.0
        %616 = vmatpush1.msra.mxu0 0.0
        %617 = vmatprep.subr.mxu0 0.0
        %618 = vmatpush1.msra.mxu0 0.0
        %619 = vmatprep.mubr.f32.mxu0 0.0
        %620 = vmatmul.mubr.f32.gmra.mrb[0].mxu0 %v546
        %v621 = vpop.f32.mrb[0].mxu0
        %v622 = vadd.f32 0.0, %v621
        %v623 = vpop.f32.mrb[0].mxu0
        %v624 = vadd.f32 0.0, %v623
        %625 = vdwg.mxu0
        %v626 = vld [vmem:[%s3] sm:$0xf]
        %628 = vset.pattern.permute.xlu0 0
        %629 = vperm.xlu0 %628, %v626
        %v630 = vpop.permute.xlu0 %629
        %v632 = vmul.f32 %v622, %v630
        %v633 = vmul.f32 %v624, %v630
        %v634 = vld [vmem:[%s4] sm:$0xf]
        %636 = vset.pattern.permute.xlu0 0
        %637 = vperm.xlu0 %636, %v634
        %v638 = vpop.permute.xlu0 %637
        %v640 = vadd.f32 %v632, %v638
        %v641 = vadd.f32 %v633, %v638
        %v642 = vmax.f32 %v640, 0.0
        %v643 = vmax.f32 %v641, 0.0
        %v644 = vld [vmem:[%s5] sm:$0xf]
        %v645 = vld [vmem:[%s6] sm:$0xf]
        %647 = vset.pattern.permute.xlu0 0
        %648 = vperm.xlu0 %647, %v645
        %v649 = vpop.permute.xlu0 %648
        %vm651 = vcmask 31744
        %v653 = vsel %vm651, %v644, 0
        %v656 = vsel %vm548, %v642, 0
        %v659 = vsel %vm548, %v643, 0
        %661 = vmatprep.subr.mxu0 %v659
        %662 = vmatpush1.msra.mxu0 %v656
        %663 = vmatprep.subr.mxu0 0.0
        %664 = vmatpush1.msra.mxu0 0.0
        %665 = vmatprep.subr.mxu0 0.0
        %666 = vmatpush1.msra.mxu0 0.0
        %667 = vmatprep.subr.mxu0 0.0
        %668 = vmatpush1.msra.mxu0 0.0
        %669 = vmatprep.subr.mxu0 0.0
        %670 = vmatpush1.msra.mxu0 0.0
        %671 = vmatprep.subr.mxu0 0.0
        %672 = vmatpush1.msra.mxu0 0.0
        %673 = vmatprep.subr.mxu0 0.0
        %674 = vmatpush1.msra.mxu0 0.0
        %675 = vmatprep.subr.mxu0 0.0
        %676 = vmatpush1.msra.mxu0 0.0
        %677 = vmatprep.subr.mxu0 0.0
        %678 = vmatpush1.msra.mxu0 0.0
        %679 = vmatprep.subr.mxu0 0.0
        %680 = vmatpush1.msra.mxu0 0.0
        %681 = vmatprep.subr.mxu0 0.0
        %682 = vmatpush1.msra.mxu0 0.0
        %683 = vmatprep.subr.mxu0 0.0
        %684 = vmatpush1.msra.mxu0 0.0
        %685 = vmatprep.subr.mxu0 0.0
        %686 = vmatpush1.msra.mxu0 0.0
        %687 = vmatprep.subr.mxu0 0.0
        %688 = vmatpush1.msra.mxu0 0.0
        %689 = vmatprep.subr.mxu0 0.0
        %690 = vmatpush1.msra.mxu0 0.0
        %691 = vmatprep.subr.mxu0 0.0
        %692 = vmatpush1.msra.mxu0 0.0
        %693 = vmatprep.subr.mxu0 0.0
        %694 = vmatpush1.msra.mxu0 0.0
        %695 = vmatprep.subr.mxu0 0.0
        %696 = vmatpush1.msra.mxu0 0.0
        %697 = vmatprep.subr.mxu0 0.0
        %698 = vmatpush1.msra.mxu0 0.0
        %699 = vmatprep.subr.mxu0 0.0
        %700 = vmatpush1.msra.mxu0 0.0
        %701 = vmatprep.subr.mxu0 0.0
        %702 = vmatpush1.msra.mxu0 0.0
        %703 = vmatprep.subr.mxu0 0.0
        %704 = vmatpush1.msra.mxu0 0.0
        %705 = vmatprep.subr.mxu0 0.0
        %706 = vmatpush1.msra.mxu0 0.0
        %707 = vmatprep.subr.mxu0 0.0
        %708 = vmatpush1.msra.mxu0 0.0
        %709 = vmatprep.subr.mxu0 0.0
        %710 = vmatpush1.msra.mxu0 0.0
        %711 = vmatprep.subr.mxu0 0.0
        %712 = vmatpush1.msra.mxu0 0.0
        %713 = vmatprep.subr.mxu0 0.0
        %714 = vmatpush1.msra.mxu0 0.0
        %715 = vmatprep.subr.mxu0 0.0
        %716 = vmatpush1.msra.mxu0 0.0
        %717 = vmatprep.subr.mxu0 0.0
        %718 = vmatpush1.msra.mxu0 0.0
        %719 = vmatprep.subr.mxu0 0.0
        %720 = vmatpush1.msra.mxu0 0.0
        %721 = vmatprep.subr.mxu0 0.0
        %722 = vmatpush1.msra.mxu0 0.0
        %723 = vmatprep.subr.mxu0 0.0
        %724 = vmatpush1.msra.mxu0 0.0
        %725 = vmatprep.mubr.f32.mxu0 0.0
        %726 = vmatmul.mubr.f32.gmra.mrb[0].mxu0 %v653
        %v727 = vpop.f32.mrb[0].mxu0
        %v728 = vadd.f32 %v649, %v727
        %v729 = vpop.f32.mrb[0].mxu0
        %v730 = vadd.f32 %v649, %v729
        %731 = vdwg.mxu0
        %v734 = vcombine.low %v728, %v730
        %736 = vst [vmem:[%s309] sm:$0xff] %v734
        %s737 = sand.u32 %s185, 1
        %s738 = scalar_lea.sflag [#allocation5], %s737
        %s739 = sand.u32 %s185, 1
        %s740 = smul.addr %s739, 8
        %s741 = scalar_lea.vmem [#allocation8], %s740
        // Predicated region
        $region57: #{tpu_custom_call.1} parent=47 // pred_check
          %p742 = pneg %p195
        $region58: #{tpu_custom_call.1} parent=47 // pred_check_branch
          %744 = sbr.rel (%p742) target = $region60
        $region59: #{tpu_custom_call.1} parent=47 // pred_region
          %s746 = ssub.s32 128, 128
          %747 = vsyncadd %s738, %s746
          %s748 = smul.addr %s25, 2
          %s749 = smul.addr %s748, 64
          %s750 = scalar_lea.hbm %s7, %s749
          %s752 = sshll.u32 %s741, 4
          %s753 = int_to_ptr.vmem [resolvable:$true] %s752
          %755 = dma.vmem_to_hbm [thread:$0]  %s753, 128, %s750, %s738
        $region60: #{tpu_custom_call.1} parent=47 // pred_fallthru
          _
      $region48: #{tpu_custom_call.1} parent=5 // pred_fallthru
        _
      %p756 = scmp.le.s32.totalorder 2, %s20
      // Predicated region
      $region61: #{tpu_custom_call.1} parent=5 // pred_check
        %p757 = pneg %p756
      $region62: #{tpu_custom_call.1} parent=5 // pred_check_branch
        %759 = sbr.rel (%p757) target = $region64
      $region63: #{tpu_custom_call.1} parent=5 // pred_region
        %s760 = ssub.s32 %s20, 2
        // Predicated region
        $region65: #{tpu_custom_call.1} parent=63 // pred_check
          %p761 = pneg %p201
        $region66: #{tpu_custom_call.1} parent=63 // pred_check_branch
          %763 = sbr.rel (%p761) target = $region68
        $region67: #{tpu_custom_call.1} parent=63 // pred_region
          %s764 = sand.u32 %s186, 1
          %s765 = scalar_lea.sflag [#allocation5], %s764
          %s766 = sand.u32 %s186, 1
          %s767 = smul.addr %s766, 8
          %s768 = scalar_lea.vmem [#allocation8], %s767
          %769 = dma.done %s765, 128
        $region68: #{tpu_custom_call.1} parent=63 // pred_fallthru
          _
      $region64: #{tpu_custom_call.1} parent=5 // pred_fallthru
        _
    $region6: #{tpu_custom_call.1} parent=1 // loop_footer
      %s24 = sadd.s32 1, %s20
    $region7: #{tpu_custom_call.1} parent=1 // loop_footer_branch
      %19 = sbr.rel target = $region3
    $region8: #{tpu_custom_call.1} parent=1 // loop_exit
      _
    %770 = vsyncpa [#allocation4], 1
    %s771 = scalar_lea.sflag [#allocation4], 1
    %772 = vsyncpa %s771, 1
    %773 = vsyncpa [#allocation7], 1
    %774 = vsyncpa [#allocation5], 1
    %s775 = scalar_lea.sflag [#allocation5], 1
    %776 = vsyncpa %s775, 1

</llo_original>
